<compile_context>
chip_gen: v5e
topology: v5e:2x2
jax: 0.10.0
libtpu: 0.0.40
codegen_flags: <defaults>
</compile_context>

<pallas_src>
import jax
import jax.numpy as jnp
from jax.experimental import pallas as pl
from jax.experimental.pallas import tpu as pltpu


# --------------------------------------------------------------------------------------
# Kernel body
# --------------------------------------------------------------------------------------
def audio_att_kernel(a_ref, w_ref, b_ref, v_ref, o_ref):
    # MXU matmul in bf16 with f32 accumulation; bias add / softmax / gating in f32.
    a = a_ref[...].astype(jnp.bfloat16)
    logits = jnp.dot(a, w_ref[...], preferred_element_type=jnp.float32) + b_ref[...]

    # Numerically stable softmax over the feature axis (PyTorch Softmax(dim=1)).
    # Note: if B % tb != 0, the padded tail rows of the last block hold stale VMEM data and
    # may produce inf/NaN here; softmax is per-row so valid rows are exact, and Pallas clips
    # the writeback of the pad rows.
    m = jnp.max(logits, axis=1, keepdims=True)
    e = jnp.exp(logits - m)
    s = jnp.sum(e, axis=1, keepdims=True)
    # Exact reciprocal (EUP slot, otherwise idle; kernel is HBM-bound) -> rows sum to 1
    # like PyTorch, no approximation error in the attention weights.
    y = e * pl.reciprocal(s, approx=False)

    # Elementwise attention gate.
    o_ref[...] = (y * v_ref[...].astype(jnp.float32)).astype(o_ref.dtype)


# --------------------------------------------------------------------------------------
# One-time parameter preparation (call at init, NOT per forward)
# --------------------------------------------------------------------------------------
def prepare_audio_att_params(weight, bias):
    """weight: PyTorch-layout [dim_video, dim_aud] (out, in); bias: [dim_video].

    Returns (w_io_bf16 [dim_aud, dim_video] bf16, bias2d [1, dim_video] f32).
    Doing this once removes per-call cast/reshape HBM traffic from the forward pass.
    """
    w_io_bf16 = jnp.asarray(weight, jnp.float32).T.astype(jnp.bfloat16)
    bias2d = jnp.asarray(bias, jnp.float32).reshape(1, -1)
    return w_io_bf16, bias2d


# --------------------------------------------------------------------------------------
# Batch-tile selection: DMA amortization + even/balanced tile count for v7x megacore
# --------------------------------------------------------------------------------------
def _round_up(x, m):
    return ((x + m - 1) // m) * m


def _pick_tb(B, tb):
    if tb is None:
        tb = 512                      # sized for DMA amortization, not MXU shape
    if tb >= B:
        return B                      # single block covering the whole batch (no-grid path)
    tb = max(8, (tb // 8) * 8)        # sublane-aligned
    n = pl.cdiv(B, tb)
    if n > 1 and n % 2 == 1:          # keep tile count even so v7x's 2 TCs stay balanced
        n += 1
    tb = min(B, _round_up(pl.cdiv(B, n), 8))   # rebalance tiles to roughly equal size
    return tb


# --------------------------------------------------------------------------------------
# Forward wrapper
# --------------------------------------------------------------------------------------
def audio_att_net(audio_emb, video_emb, w_io_bf16, bias2d, *, tb=None):
    """audio_emb [B, dim_aud], video_emb [B, dim_video],
       w_io_bf16 [dim_aud, dim_video] (pre-cast bf16), bias2d [1, dim_video] f32
       -> [B, dim_video] (dtype of video_emb)."""
    B, dim_aud = audio_emb.shape
    dim_video = w_io_bf16.shape[1]
    out_dtype = video_emb.dtype   # pass bf16 video_emb to halve the dominant HBM traffic

    tb = _pick_tb(B, tb)
    n_tiles = pl.cdiv(B, tb)

    cost = pl.CostEstimate(
        flops=2 * B * dim_aud * dim_video,
        transcendentals=B * dim_video,
        bytes_accessed=(audio_emb.size * audio_emb.dtype.itemsize
                        + video_emb.size * video_emb.dtype.itemsize
                        + w_io_bf16.size * 2 + bias2d.size * 4
                        + B * dim_video * jnp.dtype(out_dtype).itemsize),
    )

    if n_tiles == 1:
        # Tiny-B path (typical AudioAttNet regime, seq_len ~ 8-16): one block, no grid,
        # no pipelining, everything resident in VMEM for the single invocation.
        # TODO(synk): at B~8 this op is launch-overhead dominated; ideally fuse it into the
        # surrounding temporal-aggregation op rather than running a standalone pallas_call.
        return pl.pallas_call(
            audio_att_kernel,
            out_shape=jax.ShapeDtypeStruct((B, dim_video), out_dtype),
            cost_estimate=cost,
        )(audio_emb, w_io_bf16, bias2d, video_emb)

    # Large-B path: batch-tiled grid; audio/video/out streamed and software-pipelined while
    # the bf16 weight + bias blocks stay resident in VMEM (constant index_map).
    return pl.pallas_call(
        audio_att_kernel,
        out_shape=jax.ShapeDtypeStruct((B, dim_video), out_dtype),
        grid=(n_tiles,),
        in_specs=[
            pl.BlockSpec((tb, dim_aud), lambda i: (i, 0)),          # streamed audio tiles
            pl.BlockSpec((dim_aud, dim_video), lambda i: (0, 0)),   # resident bf16 weights
            pl.BlockSpec((1, dim_video), lambda i: (0, 0)),         # resident bias
            pl.BlockSpec((tb, dim_video), lambda i: (i, 0)),        # streamed video tiles
        ],
        out_specs=pl.BlockSpec((tb, dim_video), lambda i: (i, 0)),
        compiler_params=pltpu.CompilerParams(
            dimension_semantics=("parallel",),   # shard batch tiles across TCs on v7x
        ),
        cost_estimate=cost,
    )(audio_emb, w_io_bf16, bias2d, video_emb)


# --------------------------------------------------------------------------------------
# Self-contained test
# --------------------------------------------------------------------------------------
if __name__ == "__main__":
    dim_aud, dim_video = 256, 256     # module defaults; forward implies [b_s, 256] inputs

    key = jax.random.PRNGKey(0)
    k_a, k_v, k_w, k_b, k_a2, k_v2 = jax.random.split(key, 6)

    # PyTorch Linear default init: U(-1/sqrt(in), 1/sqrt(in)); weight stored as [out, in].
    bound = 1.0 / (dim_aud ** 0.5)
    weight = jax.random.uniform(k_w, (dim_video, dim_aud),
                                minval=-bound, maxval=bound, dtype=jnp.float32)
    bias = jax.random.uniform(k_b, (dim_video,),
                              minval=-bound, maxval=bound, dtype=jnp.float32)

    # One-time parameter prep (hoisted out of the forward wrapper, per review).
    w_io_bf16, bias2d = prepare_audio_att_params(weight, bias)

    def ref_f32(a, v):
        # Full-f32 reference of the PyTorch module: softmax(a @ W.T + b, dim=1) * v
        return jax.nn.softmax(a @ weight.T + bias, axis=1) * v

    # (1) Tiny-B case — the typical AudioAttNet regime (seq_len ~ 8) -> single-block path.
    B = 8
    audio_emb = jax.random.normal(k_a, (B, dim_aud), dtype=jnp.float32)
    video_emb = jax.random.normal(k_v, (B, dim_video), dtype=jnp.float32)
    out = jax.block_until_ready(audio_att_net(audio_emb, video_emb, w_io_bf16, bias2d))
    assert out.shape == (B, dim_video)

    # Matched-precision reference (bf16 matmul operands, f32 accumulation/softmax) -> tight.
    logits_bf16 = jnp.dot(audio_emb.astype(jnp.bfloat16), w_io_bf16,
                          preferred_element_type=jnp.float32) + bias
    ref_bf16 = jax.nn.softmax(logits_bf16, axis=1) * video_emb
    assert jnp.allclose(out, ref_bf16, atol=1e-3, rtol=1e-2), "mismatch vs bf16-matmul reference"
    # Full-f32 module reference -> loose (accounts for bf16 matmul operands).
    assert jnp.allclose(out, ref_f32(audio_emb, video_emb), atol=1e-2, rtol=1e-2), \
        "mismatch vs f32 reference (tiny-B path)"

    # (2) Tiled case — exercises the batch-streamed grid; tb=128 on B=320 would give an odd
    #     3-step grid, the picker rebalances to 4 x 80 so v7x's two TensorCores stay even.
    B2 = 320
    audio_emb2 = jax.random.normal(k_a2, (B2, dim_aud), dtype=jnp.float32)
    video_emb2 = jax.random.normal(k_v2, (B2, dim_video), dtype=jnp.float32)
    out2 = jax.block_until_ready(audio_att_net(audio_emb2, video_emb2, w_io_bf16, bias2d, tb=128))
    assert out2.shape == (B2, dim_video)
    assert jnp.allclose(out2, ref_f32(audio_emb2, video_emb2), atol=1e-2, rtol=1e-2), \
        "mismatch vs f32 reference (tiled path)"

    print("KERNEL_OK")
</pallas_src>

<mosaic_0001>
module attributes {stable_mosaic.version = 11 : i64} {
  func.func @audio_att_kernel(%arg0: memref<8x256xf32, #tpu.memory_space<vmem>>, %arg1: memref<256x256xbf16, #tpu.memory_space<vmem>>, %arg2: memref<1x256xf32, #tpu.memory_space<vmem>>, %arg3: memref<8x256xf32, #tpu.memory_space<vmem>>, %arg4: memref<8x256xf32, #tpu.memory_space<vmem>>) attributes {dimension_semantics = [], scalar_prefetch = 0 : i64, scratch_operands = 0 : i64, tpu.core_type = #tpu.core_type<tc>} {
    %c0 = arith.constant 0 : index
    %c0_0 = arith.constant 0 : index
    %0 = vector.load %arg0[%c0, %c0_0] : memref<8x256xf32, #tpu.memory_space<vmem>>, vector<8x256xf32>
    %1 = arith.truncf %0 : vector<8x256xf32> to vector<8x256xbf16>
    %c0_1 = arith.constant 0 : index
    %c0_2 = arith.constant 0 : index
    %2 = vector.load %arg1[%c0_1, %c0_2] : memref<256x256xbf16, #tpu.memory_space<vmem>>, vector<256x256xbf16>
    %cst = arith.constant dense<0.000000e+00> : vector<8x256xf32>
    %3 = tpu.matmul %1, %2, %cst {dimension_numbers = #tpu.dot_dimension_numbers<[1], [0], [0], [1], [0, 0, 1, 1], [], []>} : vector<8x256xbf16>, vector<256x256xbf16>, vector<8x256xf32> -> vector<8x256xf32>
    %c0_3 = arith.constant 0 : index
    %c0_4 = arith.constant 0 : index
    %4 = vector.load %arg2[%c0_3, %c0_4] : memref<1x256xf32, #tpu.memory_space<vmem>>, vector<1x256xf32>
    %5 = vector.broadcast %4 : vector<1x256xf32> to vector<8x256xf32>
    %6 = arith.addf %3, %5 : vector<8x256xf32>
    %cst_5 = arith.constant dense<0xFF800000> : vector<8xf32>
    %7 = vector.multi_reduction <maximumf>, %6, %cst_5 [1] : vector<8x256xf32> to vector<8xf32>
    %8 = vector.shape_cast %7 : vector<8xf32> to vector<8x1xf32>
    %9 = vector.broadcast %8 : vector<8x1xf32> to vector<8x256xf32>
    %10 = arith.subf %6, %9 : vector<8x256xf32>
    %11 = math.exp %10 : vector<8x256xf32>
    %cst_6 = arith.constant dense<0.000000e+00> : vector<8xf32>
    %12 = vector.multi_reduction <add>, %11, %cst_6 [1] : vector<8x256xf32> to vector<8xf32>
    %13 = vector.shape_cast %12 : vector<8xf32> to vector<8x1xf32>
    %14 = tpu.reciprocal %13 : vector<8x1xf32> -> vector<8x1xf32>
    %15 = vector.broadcast %14 : vector<8x1xf32> to vector<8x256xf32>
    %16 = arith.mulf %11, %15 : vector<8x256xf32>
    %c0_7 = arith.constant 0 : index
    %c0_8 = arith.constant 0 : index
    %17 = vector.load %arg3[%c0_7, %c0_8] : memref<8x256xf32, #tpu.memory_space<vmem>>, vector<8x256xf32>
    %18 = arith.mulf %16, %17 : vector<8x256xf32>
    %c0_9 = arith.constant 0 : index
    %c0_10 = arith.constant 0 : index
    %19 = vector.load %arg4[%c0_9, %c0_10] : memref<8x256xf32, #tpu.memory_space<vmem>>, vector<8x256xf32>
    tpu.vector_store %arg4[%c0_9, %c0_10], %18 {strides = array<i32>} : memref<8x256xf32, #tpu.memory_space<vmem>>, vector<8x256xf32>,
    return
  }
}

</mosaic_0001>

<llo_original>
// kernel: tpu_custom_call.1
$region0: #{tpu_custom_call.1}
  #allocation0 [shape = 'u32[]', space=smem, size = 0x4, offset = 0x4, fixed_abs, tag = 'smem constant byte address 0x4 - core index']
  #allocation1 [shape = 'u32[72,128]{1,0:T(1,128)}', space=vmem, size = 0x9000, scoped, tag = 'internal scratch']
  %s0 = inlined_call_operand.hbm [shape: f32[8,256], index: 0, kind: input, shape index: {}]
  %s1 = inlined_call_operand.hbm [shape: bf16[256,256], index: 1, kind: input, shape index: {}]
  %s2 = inlined_call_operand.hbm [shape: f32[1,256], index: 2, kind: input, shape index: {}]
  %s3 = inlined_call_operand.hbm [shape: f32[8,256], index: 3, kind: input, shape index: {}]
  %s4 = inlined_call_operand.hbm [shape: f32[8,256], index: 4, kind: output, shape index: {}]
  %s5 = sld [smem:[#allocation0]]
  $region42: #{tpu_custom_call.1} parent=0
    _
  %s7 = ssub.s32 1, %s5
  %s8 = scalar_select 0, %s7, %s5
  $region1: #{tpu_custom_call.1} parent=0
    #allocation2 [shape = 'u8[8192]{0}', space=vmem, size = 0x2000, scoped, tag = 'input window, operand 0, single buffered']
    #allocation3 [shape = 's32[1]{0}', space=sflag, size = 0x4, scoped, tag = 'scoped memory for tpu_custom_call.1']
    #allocation4 [shape = 's32[1]{0}', space=sflag, size = 0x4, scoped, tag = 'scoped memory for tpu_custom_call.1']
    #allocation5 [shape = 'u8[131072]{0}', space=vmem, size = 0x20000, scoped, tag = 'input window, operand 1, single buffered']
    #allocation6 [shape = 's32[1]{0}', space=sflag, size = 0x4, scoped, tag = 'scoped memory for tpu_custom_call.1']
    #allocation7 [shape = 'u8[1024]{0}', space=vmem, size = 0x400, scoped, tag = 'input window, operand 2, single buffered']
    #allocation8 [shape = 'u8[8192]{0}', space=vmem, size = 0x2000, scoped, tag = 'input window, operand 3, single buffered']
    #allocation9 [shape = 's32[1]{0}', space=sflag, size = 0x4, scoped, tag = 'scoped memory for tpu_custom_call.1']
    #allocation10 [shape = 'u8[8192]{0}', space=vmem, size = 0x2000, scoped, tag = 'output window, operand 0, single buffered']
    %9 = vsyncpa [#allocation3], 0
    %10 = vsyncpa [#allocation6], 0
    %11 = vsyncpa [#allocation9], 0
    %12 = vsyncpa [#allocation4], 0
    // Predicated region
    $region2: #{tpu_custom_call.1} parent=1 // pred_check
      _
    $region3: #{tpu_custom_call.1} parent=1 // pred_check_branch
      %14 = sbr.rel (0) target = $region5
    $region4: #{tpu_custom_call.1} parent=1 // pred_region
      %16 = vsyncadd [#allocation3], 0
      %s18 = sshll.u32 %s0, 4
      %s19 = int_to_ptr.hbm [resolvable:$true] %s18
      %s20 = sshll.u32 [#allocation2], 4
      %s21 = int_to_ptr.vmem [resolvable:$true] %s20
      %23 = dma.hbm_to_vmem [thread:$0]  %s19, 256, %s21, [#allocation3]
    $region5: #{tpu_custom_call.1} parent=1 // pred_fallthru
      _
    // Predicated region
    $region6: #{tpu_custom_call.1} parent=1 // pred_check
      _
    $region7: #{tpu_custom_call.1} parent=1 // pred_check_branch
      %25 = sbr.rel (0) target = $region9
    $region8: #{tpu_custom_call.1} parent=1 // pred_region
      %27 = vsyncadd [#allocation6], 0
      %s28 = sshll.u32 %s1, 4
      %s29 = int_to_ptr.hbm [resolvable:$true] %s28
      %s30 = sshll.u32 [#allocation5], 4
      %s31 = int_to_ptr.vmem [resolvable:$true] %s30
      %36 = dma.hbm_to_vmem [thread:$0]  %s29, 4096, %s31, [#allocation6], 128, 128, 8
    $region9: #{tpu_custom_call.1} parent=1 // pred_fallthru
      _
    // Predicated region
    $region10: #{tpu_custom_call.1} parent=1 // pred_check
      _
    $region11: #{tpu_custom_call.1} parent=1 // pred_check_branch
      %38 = sbr.rel (0) target = $region13
    $region12: #{tpu_custom_call.1} parent=1 // pred_region
      %40 = vsyncadd [#allocation6], 0
      %s42 = sshll.u32 %s2, 4
      %s43 = int_to_ptr.hbm [resolvable:$true] %s42
      %s44 = sshll.u32 [#allocation7], 4
      %s45 = int_to_ptr.vmem [resolvable:$true] %s44
      %47 = dma.hbm_to_vmem [thread:$0]  %s43, 32, %s45, [#allocation6]
    $region13: #{tpu_custom_call.1} parent=1 // pred_fallthru
      _
    // Predicated region
    $region14: #{tpu_custom_call.1} parent=1 // pred_check
      _
    $region15: #{tpu_custom_call.1} parent=1 // pred_check_branch
      %49 = sbr.rel (0) target = $region17
    $region16: #{tpu_custom_call.1} parent=1 // pred_region
      %51 = vsyncadd [#allocation9], 0
      %s53 = sshll.u32 %s3, 4
      %s54 = int_to_ptr.hbm [resolvable:$true] %s53
      %s55 = sshll.u32 [#allocation8], 4
      %s56 = int_to_ptr.vmem [resolvable:$true] %s55
      %58 = dma.hbm_to_vmem [thread:$0]  %s54, 256, %s56, [#allocation9]
    $region17: #{tpu_custom_call.1} parent=1 // pred_fallthru
      _
    // Predicated region
    $region18: #{tpu_custom_call.1} parent=1 // pred_check
      _
    $region19: #{tpu_custom_call.1} parent=1 // pred_check_branch
      %60 = sbr.rel (0) target = $region21
    $region20: #{tpu_custom_call.1} parent=1 // pred_region
      %62 = dma.done [#allocation3], 256
    $region21: #{tpu_custom_call.1} parent=1 // pred_fallthru
      _
    // Predicated region
    $region22: #{tpu_custom_call.1} parent=1 // pred_check
      _
    $region23: #{tpu_custom_call.1} parent=1 // pred_check_branch
      %64 = sbr.rel (0) target = $region25
    $region24: #{tpu_custom_call.1} parent=1 // pred_region
      %66 = dma.done [#allocation6], 4096
    $region25: #{tpu_custom_call.1} parent=1 // pred_fallthru
      _
    // Predicated region
    $region26: #{tpu_custom_call.1} parent=1 // pred_check
      _
    $region27: #{tpu_custom_call.1} parent=1 // pred_check_branch
      %68 = sbr.rel (0) target = $region29
    $region28: #{tpu_custom_call.1} parent=1 // pred_region
      %70 = dma.done [#allocation6], 32
    $region29: #{tpu_custom_call.1} parent=1 // pred_fallthru
      _
    // Predicated region
    $region30: #{tpu_custom_call.1} parent=1 // pred_check
      _
    $region31: #{tpu_custom_call.1} parent=1 // pred_check_branch
      %72 = sbr.rel (0) target = $region33
    $region32: #{tpu_custom_call.1} parent=1 // pred_region
      %74 = dma.done [#allocation9], 256
    $region33: #{tpu_custom_call.1} parent=1 // pred_fallthru
      _
    %v75 = vld [vmem:[#allocation2] sm:$0xff]
    %v76 = vld [vmem:[#allocation2 + $0x8] sm:$0xff]
    %v77 = vpack.c.bf16 %v75, %v75
    %v78 = vpack.c.bf16 %v76, %v76
    %v79 = vld [vmem:[#allocation5] sm:$0xff]
    %v80 = vld [vmem:[#allocation5 + $0x8] sm:$0xff]
    %v81 = vld [vmem:[#allocation5 + $0x10] sm:$0xff]
    %v82 = vld [vmem:[#allocation5 + $0x18] sm:$0xff]
    %v83 = vld [vmem:[#allocation5 + $0x20] sm:$0xff]
    %v84 = vld [vmem:[#allocation5 + $0x28] sm:$0xff]
    %v85 = vld [vmem:[#allocation5 + $0x30] sm:$0xff]
    %v86 = vld [vmem:[#allocation5 + $0x38] sm:$0xff]
    %v87 = vld [vmem:[#allocation5 + $0x40] sm:$0xff]
    %v88 = vld [vmem:[#allocation5 + $0x48] sm:$0xff]
    %v89 = vld [vmem:[#allocation5 + $0x50] sm:$0xff]
    %v90 = vld [vmem:[#allocation5 + $0x58] sm:$0xff]
    %v91 = vld [vmem:[#allocation5 + $0x60] sm:$0xff]
    %v92 = vld [vmem:[#allocation5 + $0x68] sm:$0xff]
    %v93 = vld [vmem:[#allocation5 + $0x70] sm:$0xff]
    %v94 = vld [vmem:[#allocation5 + $0x78] sm:$0xff]
    %v95 = vld [vmem:[#allocation5 + $0x80] sm:$0xff]
    %v96 = vld [vmem:[#allocation5 + $0x88] sm:$0xff]
    %v97 = vld [vmem:[#allocation5 + $0x90] sm:$0xff]
    %v98 = vld [vmem:[#allocation5 + $0x98] sm:$0xff]
    %v99 = vld [vmem:[#allocation5 + $0xa0] sm:$0xff]
    %v100 = vld [vmem:[#allocation5 + $0xa8] sm:$0xff]
    %v101 = vld [vmem:[#allocation5 + $0xb0] sm:$0xff]
    %v102 = vld [vmem:[#allocation5 + $0xb8] sm:$0xff]
    %v103 = vld [vmem:[#allocation5 + $0xc0] sm:$0xff]
    %v104 = vld [vmem:[#allocation5 + $0xc8] sm:$0xff]
    %v105 = vld [vmem:[#allocation5 + $0xd0] sm:$0xff]
    %v106 = vld [vmem:[#allocation5 + $0xd8] sm:$0xff]
    %v107 = vld [vmem:[#allocation5 + $0xe0] sm:$0xff]
    %v108 = vld [vmem:[#allocation5 + $0xe8] sm:$0xff]
    %v109 = vld [vmem:[#allocation5 + $0xf0] sm:$0xff]
    %v110 = vld [vmem:[#allocation5 + $0xf8] sm:$0xff]
    %v111 = vld [vmem:[#allocation7] sm:$0x3]
    %v113 = vperm.slane %v111, 0
    %v114 = vperm.slane %v111, 1
    %v149 = vunpack.c.l.b16 %v79
    %v150 = vunpack.c.h.b16 %v79
    %v151 = vunpack.c.l.b16 %v80
    %v152 = vunpack.c.h.b16 %v80
    %v153 = vunpack.c.l.b16 %v81
    %v154 = vunpack.c.h.b16 %v81
    %v155 = vunpack.c.l.b16 %v82
    %v156 = vunpack.c.h.b16 %v82
    %v157 = vunpack.c.l.b16 %v83
    %v158 = vunpack.c.h.b16 %v83
    %v159 = vunpack.c.l.b16 %v84
    %v160 = vunpack.c.h.b16 %v84
    %v161 = vunpack.c.l.b16 %v85
    %v162 = vunpack.c.h.b16 %v85
    %v163 = vunpack.c.l.b16 %v86
    %v164 = vunpack.c.h.b16 %v86
    %v165 = vunpack.c.l.b16 %v87
    %v166 = vunpack.c.h.b16 %v87
    %v167 = vunpack.c.l.b16 %v88
    %v168 = vunpack.c.h.b16 %v88
    %v169 = vunpack.c.l.b16 %v89
    %v170 = vunpack.c.h.b16 %v89
    %v171 = vunpack.c.l.b16 %v90
    %v172 = vunpack.c.h.b16 %v90
    %v173 = vunpack.c.l.b16 %v91
    %v174 = vunpack.c.h.b16 %v91
    %v175 = vunpack.c.l.b16 %v92
    %v176 = vunpack.c.h.b16 %v92
    %v177 = vunpack.c.l.b16 %v93
    %v178 = vunpack.c.h.b16 %v93
    %v179 = vunpack.c.l.b16 %v94
    %v180 = vunpack.c.h.b16 %v94
    %v181 = vunpack.c.l.b16 %v95
    %v182 = vunpack.c.h.b16 %v95
    %v183 = vunpack.c.l.b16 %v96
    %v184 = vunpack.c.h.b16 %v96
    %v185 = vunpack.c.l.b16 %v97
    %v186 = vunpack.c.h.b16 %v97
    %v187 = vunpack.c.l.b16 %v98
    %v188 = vunpack.c.h.b16 %v98
    %v189 = vunpack.c.l.b16 %v99
    %v190 = vunpack.c.h.b16 %v99
    %v191 = vunpack.c.l.b16 %v100
    %v192 = vunpack.c.h.b16 %v100
    %v193 = vunpack.c.l.b16 %v101
    %v194 = vunpack.c.h.b16 %v101
    %v195 = vunpack.c.l.b16 %v102
    %v196 = vunpack.c.h.b16 %v102
    %v197 = vunpack.c.l.b16 %v103
    %v198 = vunpack.c.h.b16 %v103
    %v199 = vunpack.c.l.b16 %v104
    %v200 = vunpack.c.h.b16 %v104
    %v201 = vunpack.c.l.b16 %v105
    %v202 = vunpack.c.h.b16 %v105
    %v203 = vunpack.c.l.b16 %v106
    %v204 = vunpack.c.h.b16 %v106
    %v205 = vunpack.c.l.b16 %v107
    %v206 = vunpack.c.h.b16 %v107
    %v207 = vunpack.c.l.b16 %v108
    %v208 = vunpack.c.h.b16 %v108
    %v209 = vunpack.c.l.b16 %v109
    %v210 = vunpack.c.h.b16 %v109
    %v211 = vunpack.c.l.b16 %v110
    %v212 = vunpack.c.h.b16 %v110
    %v213 = vpack.c.b16 %v151, %v149
    %v214 = vpack.c.b16 %v152, %v150
    %v215 = vpack.c.b16 %v155, %v153
    %v216 = vpack.c.b16 %v156, %v154
    %v217 = vpack.c.b16 %v159, %v157
    %v218 = vpack.c.b16 %v160, %v158
    %v219 = vpack.c.b16 %v163, %v161
    %v220 = vpack.c.b16 %v164, %v162
    %v221 = vpack.c.b16 %v167, %v165
    %v222 = vpack.c.b16 %v168, %v166
    %v223 = vpack.c.b16 %v171, %v169
    %v224 = vpack.c.b16 %v172, %v170
    %v225 = vpack.c.b16 %v175, %v173
    %v226 = vpack.c.b16 %v176, %v174
    %v227 = vpack.c.b16 %v179, %v177
    %v228 = vpack.c.b16 %v180, %v178
    %v229 = vpack.c.b16 %v183, %v181
    %v230 = vpack.c.b16 %v184, %v182
    %v231 = vpack.c.b16 %v187, %v185
    %v232 = vpack.c.b16 %v188, %v186
    %v233 = vpack.c.b16 %v191, %v189
    %v234 = vpack.c.b16 %v192, %v190
    %v235 = vpack.c.b16 %v195, %v193
    %v236 = vpack.c.b16 %v196, %v194
    %v237 = vpack.c.b16 %v199, %v197
    %v238 = vpack.c.b16 %v200, %v198
    %v239 = vpack.c.b16 %v203, %v201
    %v240 = vpack.c.b16 %v204, %v202
    %v241 = vpack.c.b16 %v207, %v205
    %v242 = vpack.c.b16 %v208, %v206
    %v243 = vpack.c.b16 %v211, %v209
    %v244 = vpack.c.b16 %v212, %v210
    %277 = vmatpush.bf16.msra.mxu0 %v227
    %278 = vmatpush.bf16.msra.mxu0 %v225
    %279 = vmatpush.bf16.msra.mxu0 %v223
    %280 = vmatpush.bf16.msra.mxu0 %v221
    %281 = vmatpush.bf16.msra.mxu0 %v219
    %282 = vmatpush.bf16.msra.mxu0 %v217
    %283 = vmatpush.bf16.msra.mxu0 %v215
    %284 = vmatpush.bf16.msra.mxu0 %v213
    %285 = vmatmul.bf16.gmra.mxu0 %v77
    %v286 = vpop.f32.mrf.mxu0
    %v287 = vadd.f32 %v113, %v286
    %v288 = vpop.f32.mrf.mxu0
    %289 = vdwg.mxu0
    %290 = vmatpush.bf16.msra.mxu0 %v243
    %291 = vmatpush.bf16.msra.mxu0 %v241
    %292 = vmatpush.bf16.msra.mxu0 %v239
    %293 = vmatpush.bf16.msra.mxu0 %v237
    %294 = vmatpush.bf16.msra.mxu0 %v235
    %295 = vmatpush.bf16.msra.mxu0 %v233
    %296 = vmatpush.bf16.msra.mxu0 %v231
    %297 = vmatpush.bf16.msra.mxu0 %v229
    %298 = vmatmul.bf16.gmra.mxu0 %v78
    %v299 = vpop.f32.mrf.mxu0
    %v300 = vadd.f32 %v287, %v299
    %v301 = vpop.f32.mrf.mxu0
    %302 = vdwg.mxu0
    %303 = vmatpush.bf16.msra.mxu0 %v228
    %304 = vmatpush.bf16.msra.mxu0 %v226
    %305 = vmatpush.bf16.msra.mxu0 %v224
    %306 = vmatpush.bf16.msra.mxu0 %v222
    %307 = vmatpush.bf16.msra.mxu0 %v220
    %308 = vmatpush.bf16.msra.mxu0 %v218
    %309 = vmatpush.bf16.msra.mxu0 %v216
    %310 = vmatpush.bf16.msra.mxu0 %v214
    %311 = vmatmul.bf16.gmra.mxu0 %v77
    %v312 = vpop.f32.mrf.mxu0
    %v313 = vadd.f32 %v114, %v312
    %v314 = vpop.f32.mrf.mxu0
    %315 = vdwg.mxu0
    %316 = vmatpush.bf16.msra.mxu0 %v244
    %317 = vmatpush.bf16.msra.mxu0 %v242
    %318 = vmatpush.bf16.msra.mxu0 %v240
    %319 = vmatpush.bf16.msra.mxu0 %v238
    %320 = vmatpush.bf16.msra.mxu0 %v236
    %321 = vmatpush.bf16.msra.mxu0 %v234
    %322 = vmatpush.bf16.msra.mxu0 %v232
    %323 = vmatpush.bf16.msra.mxu0 %v230
    %324 = vmatmul.bf16.gmra.mxu0 %v78
    %v325 = vpop.f32.mrf.mxu0
    %v326 = vadd.f32 %v313, %v325
    %v327 = vpop.f32.mrf.mxu0
    %328 = vdwg.mxu0
    %v329 = vmax.f32 %v300, %v326
    %330 = vmax.xlane.f32.xlu0 %v329
    %v331 = vpop.xlane.xlu0 %330
    %v332 = vsub.f32 %v300, %v331
    %v333 = vsub.f32 %v326, %v331
    %v334 = vmul.f32 %v332, 1.442695
    %v335 = vpow.pop %v334
    %v336 = vmul.f32 %v333, 1.442695
    %v337 = vpow.pop %v336
    %v338 = vadd.f32 %v335, %v337
    %339 = vadd.xlane.f32.xlu0 %v338
    %v340 = vpop.xlane.xlu0 %339
    %v341 = vrcp.pop %v340
    %v342 = vmul.f32 %v340, %v341
    %v343 = vsub.f32 1.0, %v342
    %v344 = vmul.f32 %v341, %v343
    %v345 = vadd.f32 %v341, %v344
    %vm346 = vweird.f32 %v340
    %vm347 = vweird.f32 %v341
    %vm348 = vmor %vm346, %vm347
    %v349 = vsel %vm348, %v341, %v345
    %v350 = vand.u32 2147483647, %v340
    %vm351 = vcmp.eq.f32.partialorder %v350, 8.507059e+37
    %v352 = vand.u32 %v340, 2147483648
    %v353 = vor.u32 1.1754944e-38, %v352
    %v354 = vsel %vm351, %v353, %v349
    %v355 = vmul.f32 %v335, %v354
    %v356 = vmul.f32 %v337, %v354
    %v357 = vld [vmem:[#allocation8] sm:$0xff]
    %v358 = vld [vmem:[#allocation8 + $0x8] sm:$0xff]
    %v359 = vmul.f32 %v355, %v357
    %v360 = vmul.f32 %v356, %v358
    %361 = vst [vmem:[#allocation10] sm:$0xff] %v359
    %362 = vst [vmem:[#allocation10 + $0x8] sm:$0xff] %v360
    // Predicated region
    $region34: #{tpu_custom_call.1} parent=1 // pred_check
      _
    $region35: #{tpu_custom_call.1} parent=1 // pred_check_branch
      %364 = sbr.rel (0) target = $region37
    $region36: #{tpu_custom_call.1} parent=1 // pred_region
      %366 = vsyncadd [#allocation4], 0
      %s368 = sshll.u32 [#allocation10], 4
      %s369 = int_to_ptr.vmem [resolvable:$true] %s368
      %s370 = sshll.u32 %s4, 4
      %s371 = int_to_ptr.hbm [resolvable:$true] %s370
      %373 = dma.vmem_to_hbm [thread:$0]  %s369, 256, %s371, [#allocation4]
    $region37: #{tpu_custom_call.1} parent=1 // pred_fallthru
      _
    // Predicated region
    $region38: #{tpu_custom_call.1} parent=1 // pred_check
      _
    $region39: #{tpu_custom_call.1} parent=1 // pred_check_branch
      %375 = sbr.rel (0) target = $region41
    $region40: #{tpu_custom_call.1} parent=1 // pred_region
      %377 = dma.done [#allocation4], 256
    $region41: #{tpu_custom_call.1} parent=1 // pred_fallthru
      _
    %378 = vsyncpa [#allocation3], 1
    %379 = vsyncpa [#allocation6], 1
    %380 = vsyncpa [#allocation9], 1
    %381 = vsyncpa [#allocation4], 1

</llo_original>
